<compile_context>
chip_gen: v5e
topology: v5e:2x2
jax: 0.10.0
libtpu: 0.0.40
codegen_flags: <defaults>
</compile_context>

<pallas_src>
import jax
import jax.numpy as jnp
from jax.experimental import pallas as pl
from jax.experimental.pallas import tpu as pltpu


def _round_up(n: int, m: int) -> int:
    return ((n + m - 1) // m) * m


def _vmem_capacity_bytes() -> int:
    """Physical per-core VMEM; conservative 64 MiB (v7x per-TC) fallback."""
    try:
        info = pltpu.get_tpu_info()
        cap = int(getattr(info, "vmem_capacity_bytes", 0) or 0)
        if cap > 0:
            return cap
    except Exception:
        pass
    return 64 * 1024 * 1024


def decoder_kernel(x_ref, w1_ref, b1_ref, w2_ref, b2_ref, o_ref):
    # x: (tm, K) input dtype; w1: (K, H), w2: (H, N) compute dtype (resident);
    # b1: (1, H), b2: (1, N) f32; o: (tm, N) out dtype.
    cdt = w1_ref.dtype
    x = x_ref[...].astype(cdt)                              # in-kernel cast (VPU)
    h = jnp.dot(x, w1_ref[...], preferred_element_type=jnp.float32)
    h = jnp.maximum(h + b1_ref[...], 0.0)                   # f32 epilogue (v5e-safe)
    out = jnp.dot(h.astype(cdt), w2_ref[...],
                  preferred_element_type=jnp.float32) + b2_ref[...]
    o_ref[...] = out.astype(o_ref.dtype)


def prepare_decoder_params(w1, b1, w2, b2, *, compute_dtype=jnp.bfloat16):
    """One-time parameter prep (call once, reuse across forward calls).

    Weights are cast to `compute_dtype` (bf16 by default -- matmul operands in
    bf16 with f32 accumulation; pass jnp.float32 for exact f32 matmuls).
    Biases stay f32, shaped (1, n). No padding is needed because the kernel
    keeps weights whole-array resident in VMEM.
    """
    w1c = jnp.asarray(w1, compute_dtype)
    w2c = jnp.asarray(w2, compute_dtype)
    b1c = jnp.asarray(b1, jnp.float32).reshape(1, -1)
    b2c = jnp.asarray(b2, jnp.float32).reshape(1, -1)
    return w1c, b1c, w2c, b2c


def decoder_forward(x, params, *, block_m: int = 512, out_dtype=None,
                    x_buffers: int = 2):
    """x: (B, n_bottleneck); params from prepare_decoder_params."""
    w1, b1, w2, b2 = params
    B, K = x.shape
    Kw, H = w1.shape
    Hw, N = w2.shape
    assert K == Kw and H == Hw, "param shapes do not match input"
    out_dtype = x.dtype if out_dtype is None else out_dtype

    cbytes = jnp.dtype(w1.dtype).itemsize
    obytes = jnp.dtype(out_dtype).itemsize
    xbytes = jnp.dtype(x.dtype).itemsize

    def vmem_budget(tm):
        return ((K * H + H * N) * cbytes           # weights, single-buffered
                + (H + N) * 4                      # biases (f32)
                + max(x_buffers, 2) * tm * K * xbytes   # pipelined x tiles
                + 2 * tm * N * obytes              # pipelined out tiles
                + tm * H * 4)                      # f32 hidden / accumulators

    # --- batch tile selection --------------------------------------------
    tm = _round_up(min(block_m, B), 8)
    if B >= 16 and tm >= B:
        # v7x megacore: make sure the "parallel" grid axis has >= 2 tiles.
        tm = min(tm, _round_up((B + 1) // 2, 8))
    cap = _vmem_capacity_bytes()
    while tm > 8 and vmem_budget(tm) > int(cap * 0.75):
        tm = max(8, _round_up(tm // 2, 8))

    B_pad = _round_up(B, tm)
    if B_pad != B:
        x = jnp.zeros((B_pad, K), x.dtype).at[:B, :].set(x)

    grid = (B_pad // tm,)

    # --- specs -------------------------------------------------------------
    if x_buffers == 2:
        x_spec = pl.BlockSpec((tm, K), lambda i: (i, 0))
    else:  # deeper pipelining for thin (DMA-bound) layers
        x_spec = pl.BlockSpec((tm, K), lambda i: (i, 0),
                              pipeline_mode=pl.Buffered(x_buffers))
    resident = pl.BlockSpec(memory_space=pltpu.MemorySpace.VMEM)

    budget = vmem_budget(tm)
    cp_kwargs = dict(dimension_semantics=("parallel",))
    if budget > 12 * 1024 * 1024:
        cp_kwargs["vmem_limit_bytes"] = max(
            budget, min(budget * 3 // 2, int(cap * 0.8)))
    compiler_params = pltpu.CompilerParams(**cp_kwargs)

    cost = pl.CostEstimate(
        flops=2 * B_pad * (K * H + H * N),
        transcendentals=0,
        bytes_accessed=(B_pad * K * xbytes + (K * H + H * N) * cbytes
                        + (H + N) * 4 + B_pad * N * obytes),
    )

    out = pl.pallas_call(
        decoder_kernel,
        out_shape=jax.ShapeDtypeStruct((B_pad, N), out_dtype),
        grid_spec=pltpu.PrefetchScalarGridSpec(
            num_scalar_prefetch=0,
            grid=grid,
            in_specs=[
                x_spec,      # x tile, auto-pipelined over the batch grid
                resident,    # w1: whole array in VMEM, single-buffered
                resident,    # b1
                resident,    # w2
                resident,    # b2
            ],
            out_specs=pl.BlockSpec((tm, N), lambda i: (i, 0)),
        ),
        compiler_params=compiler_params,
        cost_estimate=cost,
    )(x, w1, b1, w2, b2)

    return out if B_pad == B else out[:B]


def init_decoder_params(key, n_bottleneck, n_hidden, n_output, dtype=jnp.float32):
    """Mimics nn.Linear's uniform(-1/sqrt(fan_in), 1/sqrt(fan_in)); weights pre-transposed."""
    k1, k2, k3, k4 = jax.random.split(key, 4)
    bound1 = 1.0 / (n_bottleneck ** 0.5)
    bound2 = 1.0 / (n_hidden ** 0.5)
    w1 = jax.random.uniform(k1, (n_bottleneck, n_hidden), dtype, -bound1, bound1)
    b1 = jax.random.uniform(k2, (n_hidden,), dtype, -bound1, bound1)
    w2 = jax.random.uniform(k3, (n_hidden, n_output), dtype, -bound2, bound2)
    b2 = jax.random.uniform(k4, (n_output,), dtype, -bound2, bound2)
    return w1, b1, w2, b2


if __name__ == "__main__":
    # Shapes consistent with the module: Linear(n_bottleneck, n_hidden),
    # Linear(n_hidden, n_output) acting on (batch, n_bottleneck).
    batch, n_bottleneck, n_hidden, n_output = 8, 32, 64, 16

    key = jax.random.PRNGKey(0)
    kx, kp = jax.random.split(key)
    x = jax.random.normal(kx, (batch, n_bottleneck), jnp.float32)
    w1, b1, w2, b2 = init_decoder_params(kp, n_bottleneck, n_hidden, n_output)

    # --- default bf16-matmul precision contract ---------------------------
    params = prepare_decoder_params(w1, b1, w2, b2)          # one-time prep
    out = jax.block_until_ready(decoder_forward(x, params))
    assert out.shape == (batch, n_output) and out.dtype == x.dtype

    # Reference with matching bf16 matmul operands / f32 accumulation
    # (eval-mode dropout == identity).
    xb, w1b, w2b = (x.astype(jnp.bfloat16), w1.astype(jnp.bfloat16),
                    w2.astype(jnp.bfloat16))
    h_ref = jnp.maximum(
        jnp.dot(xb, w1b, preferred_element_type=jnp.float32) + b1[None, :], 0.0)
    ref = jnp.dot(h_ref.astype(jnp.bfloat16), w2b,
                  preferred_element_type=jnp.float32) + b2[None, :]
    assert jnp.allclose(out, ref, atol=2e-3, rtol=2e-3)

    # Loose sanity check against the pure-f32 math of the original module.
    ref_f32 = jnp.maximum(x @ w1 + b1[None, :], 0.0) @ w2 + b2[None, :]
    assert jnp.allclose(out, ref_f32, atol=5e-2, rtol=5e-2)

    # --- exact-f32 precision flag ------------------------------------------
    params_f32 = prepare_decoder_params(w1, b1, w2, b2, compute_dtype=jnp.float32)
    out_f32 = jax.block_until_ready(decoder_forward(x, params_f32))
    assert jnp.allclose(out_f32, ref_f32, atol=1e-2, rtol=1e-2)

    # --- uneven batch / multi-tile grid path --------------------------------
    x2 = jax.random.normal(jax.random.PRNGKey(1), (20, n_bottleneck), jnp.float32)
    out2 = jax.block_until_ready(decoder_forward(x2, params, block_m=8))
    h2 = jnp.maximum(jnp.dot(x2.astype(jnp.bfloat16), w1b,
                             preferred_element_type=jnp.float32) + b1[None, :], 0.0)
    ref2 = jnp.dot(h2.astype(jnp.bfloat16), w2b,
                   preferred_element_type=jnp.float32) + b2[None, :]
    assert out2.shape == (20, n_output)
    assert jnp.allclose(out2, ref2, atol=2e-3, rtol=2e-3)

    print("KERNEL_OK")
</pallas_src>

<mosaic_0001>
module attributes {stable_mosaic.version = 11 : i64} {
  func.func @decoder_kernel(%arg0: i32, %arg1: memref<8x32xf32, #tpu.memory_space<vmem>>, %arg2: memref<32x64xbf16, #tpu.memory_space<vmem>>, %arg3: memref<1x64xf32, #tpu.memory_space<vmem>>, %arg4: memref<64x16xbf16, #tpu.memory_space<vmem>>, %arg5: memref<1x16xf32, #tpu.memory_space<vmem>>, %arg6: memref<8x16xf32, #tpu.memory_space<vmem>>) attributes {dimension_semantics = [#tpu.dimension_semantics<parallel>], iteration_bounds = array<i64: 1>, scalar_prefetch = 0 : i64, scratch_operands = 0 : i64, tpu.core_type = #tpu.core_type<tc>, window_params = [{transform_indices = @transform_0, window_bounds = array<i64: 8, 32>}, {pipeline_mode = #tpu.pipeline_mode<synchronous>, transform_indices = @transform_1, window_bounds = array<i64: 32, 64>}, {pipeline_mode = #tpu.pipeline_mode<synchronous>, transform_indices = @transform_2, window_bounds = array<i64: 1, 64>}, {pipeline_mode = #tpu.pipeline_mode<synchronous>, transform_indices = @transform_3, window_bounds = array<i64: 64, 16>}, {pipeline_mode = #tpu.pipeline_mode<synchronous>, transform_indices = @transform_4, window_bounds = array<i64: 1, 16>}, {transform_indices = @transform_5, window_bounds = array<i64: 8, 16>}]} {
    %c0 = arith.constant 0 : index
    %c0_0 = arith.constant 0 : index
    %0 = vector.load %arg1[%c0, %c0_0] : memref<8x32xf32, #tpu.memory_space<vmem>>, vector<8x32xf32>
    %1 = arith.truncf %0 : vector<8x32xf32> to vector<8x32xbf16>
    %c0_1 = arith.constant 0 : index
    %c0_2 = arith.constant 0 : index
    %2 = vector.load %arg2[%c0_1, %c0_2] : memref<32x64xbf16, #tpu.memory_space<vmem>>, vector<32x64xbf16>
    %cst = arith.constant dense<0.000000e+00> : vector<8x64xf32>
    %3 = tpu.matmul %1, %2, %cst {dimension_numbers = #tpu.dot_dimension_numbers<[1], [0], [0], [1], [0, 0, 1, 1], [], []>} : vector<8x32xbf16>, vector<32x64xbf16>, vector<8x64xf32> -> vector<8x64xf32>
    %c0_3 = arith.constant 0 : index
    %c0_4 = arith.constant 0 : index
    %4 = vector.load %arg3[%c0_3, %c0_4] : memref<1x64xf32, #tpu.memory_space<vmem>>, vector<1x64xf32>
    %5 = vector.broadcast %4 : vector<1x64xf32> to vector<8x64xf32>
    %6 = arith.addf %3, %5 : vector<8x64xf32>
    %cst_5 = arith.constant 0.000000e+00 : f32
    %7 = vector.broadcast %cst_5 : f32 to vector<8x64xf32>
    %8 = arith.maximumf %6, %7 : vector<8x64xf32>
    %9 = arith.truncf %8 : vector<8x64xf32> to vector<8x64xbf16>
    %c0_6 = arith.constant 0 : index
    %c0_7 = arith.constant 0 : index
    %10 = vector.load %arg4[%c0_6, %c0_7] : memref<64x16xbf16, #tpu.memory_space<vmem>>, vector<64x16xbf16>
    %cst_8 = arith.constant dense<0.000000e+00> : vector<8x16xf32>
    %11 = tpu.matmul %9, %10, %cst_8 {dimension_numbers = #tpu.dot_dimension_numbers<[1], [0], [0], [1], [0, 0, 1, 1], [], []>} : vector<8x64xbf16>, vector<64x16xbf16>, vector<8x16xf32> -> vector<8x16xf32>
    %c0_9 = arith.constant 0 : index
    %c0_10 = arith.constant 0 : index
    %12 = vector.load %arg5[%c0_9, %c0_10] : memref<1x16xf32, #tpu.memory_space<vmem>>, vector<1x16xf32>
    %13 = vector.broadcast %12 : vector<1x16xf32> to vector<8x16xf32>
    %14 = arith.addf %11, %13 : vector<8x16xf32>
    %c0_11 = arith.constant 0 : index
    %c0_12 = arith.constant 0 : index
    %15 = vector.load %arg6[%c0_11, %c0_12] : memref<8x16xf32, #tpu.memory_space<vmem>>, vector<8x16xf32>
    tpu.vector_store %arg6[%c0_11, %c0_12], %14 {strides = array<i32>} : memref<8x16xf32, #tpu.memory_space<vmem>>, vector<8x16xf32>,
    return
  }
  func.func @transform_0(%arg0: i32) -> (i32, i32) {
    %c0_i32 = arith.constant 0 : i32
    %c0_i32_0 = arith.constant 0 : i32
    return %arg0, %c0_i32 : i32, i32
  }
  func.func @transform_1(%arg0: i32) -> (i32, i32) {
    %c0_i32 = arith.constant 0 : i32
    %c0_i32_0 = arith.constant 0 : i32
    %c0_i32_1 = arith.constant 0 : i32
    return %c0_i32, %c0_i32_0 : i32, i32
  }
  func.func @transform_2(%arg0: i32) -> (i32, i32) {
    %c0_i32 = arith.constant 0 : i32
    %c0_i32_0 = arith.constant 0 : i32
    %c0_i32_1 = arith.constant 0 : i32
    return %c0_i32, %c0_i32_0 : i32, i32
  }
  func.func @transform_3(%arg0: i32) -> (i32, i32) {
    %c0_i32 = arith.constant 0 : i32
    %c0_i32_0 = arith.constant 0 : i32
    %c0_i32_1 = arith.constant 0 : i32
    return %c0_i32, %c0_i32_0 : i32, i32
  }
  func.func @transform_4(%arg0: i32) -> (i32, i32) {
    %c0_i32 = arith.constant 0 : i32
    %c0_i32_0 = arith.constant 0 : i32
    %c0_i32_1 = arith.constant 0 : i32
    return %c0_i32, %c0_i32_0 : i32, i32
  }
  func.func @transform_5(%arg0: i32) -> (i32, i32) {
    %c0_i32 = arith.constant 0 : i32
    %c0_i32_0 = arith.constant 0 : i32
    return %arg0, %c0_i32 : i32, i32
  }
}

</mosaic_0001>

<llo_original>
// kernel: tpu_custom_call.1
$region0: #{tpu_custom_call.1}
  #allocation0 [shape = 'u32[]', space=smem, size = 0x4, offset = 0x4, fixed_abs, tag = 'smem constant byte address 0x4 - core index']
  #allocation1 [shape = 'u32[72,128]{1,0:T(1,128)}', space=vmem, size = 0x9000, scoped, tag = 'internal scratch']
  %s0 = inlined_call_operand.vmem [shape: f32[8,32], index: 0, kind: input, shape index: {}]
  %s1 = inlined_call_operand.vmem [shape: bf16[32,64], index: 1, kind: input, shape index: {}]
  %s2 = inlined_call_operand.vmem [shape: f32[1,64], index: 2, kind: input, shape index: {}]
  %s3 = inlined_call_operand.vmem [shape: bf16[64,16], index: 3, kind: input, shape index: {}]
  %s4 = inlined_call_operand.vmem [shape: f32[1,16], index: 4, kind: input, shape index: {}]
  %s5 = inlined_call_operand.hbm [shape: f32[8,16], index: 5, kind: output, shape index: {}]
  %s6 = sld [smem:[#allocation0]]
  $region30: #{tpu_custom_call.1} parent=0
    _
  %s8 = ssub.s32 1, %s6
  %s9 = scalar_select 0, %s8, %s6
  $region1: #{tpu_custom_call.1} parent=0
    #allocation2 [shape = 'u8[4096]{0}', space=vmem, size = 0x1000, scoped, tag = 'output window, operand 0, single buffered']
    #allocation3 [shape = 's32[1]{0}', space=sflag, size = 0x4, scoped, tag = 'scoped memory for tpu_custom_call.1']
    %10 = vsyncpa [#allocation3], 0
    // Predicated region
    $region2: #{tpu_custom_call.1} parent=1 // pred_check
      _
    $region3: #{tpu_custom_call.1} parent=1 // pred_check_branch
      %12 = sbr.rel (0) target = $region5
    $region4: #{tpu_custom_call.1} parent=1 // pred_region
      _
    $region5: #{tpu_custom_call.1} parent=1 // pred_fallthru
      _
    // Predicated region
    $region6: #{tpu_custom_call.1} parent=1 // pred_check
      _
    $region7: #{tpu_custom_call.1} parent=1 // pred_check_branch
      %14 = sbr.rel (0) target = $region9
    $region8: #{tpu_custom_call.1} parent=1 // pred_region
      _
    $region9: #{tpu_custom_call.1} parent=1 // pred_fallthru
      _
    // Predicated region
    $region10: #{tpu_custom_call.1} parent=1 // pred_check
      _
    $region11: #{tpu_custom_call.1} parent=1 // pred_check_branch
      %16 = sbr.rel (0) target = $region13
    $region12: #{tpu_custom_call.1} parent=1 // pred_region
      _
    $region13: #{tpu_custom_call.1} parent=1 // pred_fallthru
      _
    // Predicated region
    $region14: #{tpu_custom_call.1} parent=1 // pred_check
      _
    $region15: #{tpu_custom_call.1} parent=1 // pred_check_branch
      %18 = sbr.rel (0) target = $region17
    $region16: #{tpu_custom_call.1} parent=1 // pred_region
      _
    $region17: #{tpu_custom_call.1} parent=1 // pred_fallthru
      _
    // Predicated region
    $region18: #{tpu_custom_call.1} parent=1 // pred_check
      _
    $region19: #{tpu_custom_call.1} parent=1 // pred_check_branch
      %20 = sbr.rel (0) target = $region21
    $region20: #{tpu_custom_call.1} parent=1 // pred_region
      _
    $region21: #{tpu_custom_call.1} parent=1 // pred_fallthru
      _
    %v22 = vld [vmem:[%s0] sm:$0xff]
    %v23 = vpack.c.bf16 %v22, %v22
    %v24 = vld [vmem:[%s1] sm:$0xf]
    %v25 = vld [vmem:[%s1 + $0x4] sm:$0xf]
    %v26 = vld [vmem:[%s1 + $0x8] sm:$0xf]
    %v27 = vld [vmem:[%s1 + $0xc] sm:$0xf]
    %v28 = vld [vmem:[%s2] sm:$0x1]
    %v30 = vperm.slane %v28, 0
    %v36 = vunpack.c.l.b16 %v24
    %v37 = vunpack.c.l.b16 %v25
    %v38 = vunpack.c.l.b16 %v26
    %v39 = vunpack.c.l.b16 %v27
    %v40 = vpack.c.b16 %v37, %v36
    %v41 = vpack.c.b16 %v39, %v38
    %vm44 = vcmask 261120
    %v46 = vsel %vm44, %v23, 0
    %48 = vmatpush.bf16.msra.mxu0 0
    %49 = vmatpush.bf16.msra.mxu0 0
    %50 = vmatpush.bf16.msra.mxu0 0
    %51 = vmatpush.bf16.msra.mxu0 0
    %52 = vmatpush.bf16.msra.mxu0 0
    %53 = vmatpush.bf16.msra.mxu0 0
    %54 = vmatpush.bf16.msra.mxu0 %v41
    %55 = vmatpush.bf16.msra.mxu0 %v40
    %56 = vmatmul.bf16.gmra.mxu0 %v46
    %v57 = vpop.f32.mrf.mxu0
    %v58 = vadd.f32 %v30, %v57
    %v59 = vpop.f32.mrf.mxu0
    %60 = vdwg.mxu0
    %v61 = vmax.f32 %v58, 0.0
    %v62 = vpack.c.bf16 %v61, %v61
    %v63 = vld [vmem:[%s3] sm:$0xf]
    %v64 = vld [vmem:[%s3 + $0x4] sm:$0xf]
    %v65 = vld [vmem:[%s3 + $0x8] sm:$0xf]
    %v66 = vld [vmem:[%s3 + $0xc] sm:$0xf]
    %v67 = vld [vmem:[%s3 + $0x10] sm:$0xf]
    %v68 = vld [vmem:[%s3 + $0x14] sm:$0xf]
    %v69 = vld [vmem:[%s3 + $0x18] sm:$0xf]
    %v70 = vld [vmem:[%s3 + $0x1c] sm:$0xf]
    %v71 = vld [vmem:[%s4] sm:$0x1]
    %v73 = vperm.slane %v71, 0
    %v83 = vunpack.c.l.b16 %v63
    %v84 = vunpack.c.l.b16 %v64
    %v85 = vunpack.c.l.b16 %v65
    %v86 = vunpack.c.l.b16 %v66
    %v87 = vunpack.c.l.b16 %v67
    %v88 = vunpack.c.l.b16 %v68
    %v89 = vunpack.c.l.b16 %v69
    %v90 = vunpack.c.l.b16 %v70
    %v91 = vpack.c.b16 %v84, %v83
    %v92 = vpack.c.b16 %v86, %v85
    %v93 = vpack.c.b16 %v88, %v87
    %v94 = vpack.c.b16 %v90, %v89
    %vm99 = vcmask 523264
    %v101 = vsel %vm99, %v62, 0
    %103 = vmatpush.bf16.msra.mxu0 0
    %104 = vmatpush.bf16.msra.mxu0 0
    %105 = vmatpush.bf16.msra.mxu0 0
    %106 = vmatpush.bf16.msra.mxu0 0
    %107 = vmatpush.bf16.msra.mxu0 %v94
    %108 = vmatpush.bf16.msra.mxu0 %v93
    %109 = vmatpush.bf16.msra.mxu0 %v92
    %110 = vmatpush.bf16.msra.mxu0 %v91
    %111 = vmatmul.bf16.gmra.mxu0 %v101
    %v112 = vpop.f32.mrf.mxu0
    %v113 = vadd.f32 %v73, %v112
    %v114 = vpop.f32.mrf.mxu0
    %115 = vdwg.mxu0
    %vm116 = vcmask 130048
    %117 = vst.msk [vmem:[#allocation2] sm:$0xff] %vm116, %v113
    // Predicated region
    $region22: #{tpu_custom_call.1} parent=1 // pred_check
      _
    $region23: #{tpu_custom_call.1} parent=1 // pred_check_branch
      %119 = sbr.rel (0) target = $region25
    $region24: #{tpu_custom_call.1} parent=1 // pred_region
      %121 = vsyncadd [#allocation3], 0
      %s123 = sshll.u32 [#allocation2], 4
      %s124 = int_to_ptr.vmem [resolvable:$true] %s123
      %s125 = sshll.u32 %s5, 4
      %s126 = int_to_ptr.hbm [resolvable:$true] %s125
      %128 = dma.vmem_to_hbm [thread:$0]  %s124, 128, %s126, [#allocation3]
    $region25: #{tpu_custom_call.1} parent=1 // pred_fallthru
      _
    // Predicated region
    $region26: #{tpu_custom_call.1} parent=1 // pred_check
      _
    $region27: #{tpu_custom_call.1} parent=1 // pred_check_branch
      %130 = sbr.rel (0) target = $region29
    $region28: #{tpu_custom_call.1} parent=1 // pred_region
      %132 = dma.done [#allocation3], 128
    $region29: #{tpu_custom_call.1} parent=1 // pred_fallthru
      _
    %133 = vsyncpa [#allocation3], 1

</llo_original>
